<compile_context>
chip_gen: v5e
topology: v5e:2x2
jax: 0.10.0
libtpu: 0.0.40
codegen_flags: <defaults>
</compile_context>

<pallas_src>
import functools

import jax
import jax.numpy as jnp
from jax.experimental import pallas as pl
from jax.experimental.pallas import tpu as pltpu

LANE = 128


def _round_up(x, m):
    return (x + m - 1) // m * m


# -----------------------------------------------------------------------------
# Fused whole-network kernel: grid = (n_layers,), sequential ("arbitrary").
# A_hat, H0 and the output (used as the resident running H) keep a constant
# block index, so they are DMA'd once and stay in VMEM across all layers.
# -----------------------------------------------------------------------------
def _gcn_stack_kernel(a_ref, h0_ref, w_ref, b_ref, o_ref):
    l = pl.program_id(0)
    last = pl.num_programs(0) - 1

    @pl.when(l == 0)
    def _():
        o_ref[...] = h0_ref[...]                      # seed the running H

    h = o_ref[...]                                    # running H, f32, lane-padded
    # Feature transform then aggregation. bf16 MXU inputs, f32 accumulation.
    hw = jnp.dot(h.astype(jnp.bfloat16), w_ref[0].astype(jnp.bfloat16),
                 preferred_element_type=jnp.float32)
    agg = jnp.dot(a_ref[...], hw.astype(jnp.bfloat16),
                  preferred_element_type=jnp.float32)
    out = agg + b_ref[0]                              # f32 epilogue (VPU)

    @pl.when(l != last)
    def _():
        o_ref[...] = jnp.maximum(out, 0.0)            # ReLU on all but last layer

    @pl.when(l == last)
    def _():
        o_ref[...] = out                              # final layer: no activation


def _gcn_forward_fused(a_bf16, h0_pad, w_stack, b_stack):
    n = a_bf16.shape[0]
    n_layers, f_pad, _ = w_stack.shape
    flops = 2 * n_layers * (n * f_pad * f_pad + n * n * f_pad)
    bytes_accessed = (2 * n * n + 2 * 4 * n * f_pad
                      + 4 * n_layers * (f_pad * f_pad + f_pad))
    return pl.pallas_call(
        _gcn_stack_kernel,
        out_shape=jax.ShapeDtypeStruct((n, f_pad), jnp.float32),
        grid=(n_layers,),
        in_specs=[
            pl.BlockSpec((n, n), lambda l: (0, 0)),              # A_hat (resident)
            pl.BlockSpec((n, f_pad), lambda l: (0, 0)),          # H0 (resident)
            pl.BlockSpec((1, f_pad, f_pad), lambda l: (l, 0, 0)),  # W_l
            pl.BlockSpec((1, 1, f_pad), lambda l: (l, 0, 0)),      # b_l
        ],
        out_specs=pl.BlockSpec((n, f_pad), lambda l: (0, 0)),    # running H / out
        compiler_params=pltpu.CompilerParams(
            dimension_semantics=("arbitrary",),       # layers are sequential
            vmem_limit_bytes=32 * 1024 * 1024),
        cost_estimate=pl.CostEstimate(flops=flops, transcendentals=0,
                                      bytes_accessed=bytes_accessed),
    )(a_bf16, h0_pad, w_stack, b_stack)


# -----------------------------------------------------------------------------
# Scalable fallback: one row-tiled pallas_call per layer. Row tiles of A_hat
# are independent -> "parallel" grid (both v7x TensorCores used). Aggregating
# first, (A_tile @ H) @ W, avoids any cross-tile scratch and matches the FLOPs
# of the transform-first order once everything is padded to the same width.
# -----------------------------------------------------------------------------
def _graphconv_rowtile_kernel(a_ref, h_ref, w_ref, b_ref, o_ref, *, apply_relu):
    ah = jnp.dot(a_ref[...], h_ref[...].astype(jnp.bfloat16),
                 preferred_element_type=jnp.float32)
    out = jnp.dot(ah.astype(jnp.bfloat16), w_ref[...].astype(jnp.bfloat16),
                  preferred_element_type=jnp.float32)
    out = out + b_ref[...]
    if apply_relu:
        out = jnp.maximum(out, 0.0)
    o_ref[...] = out


def _graph_conv_rowtiled(a_bf16, h_pad, w_pad, b_pad, *, apply_relu, row_tile):
    n = a_bf16.shape[0]
    f_pad = w_pad.shape[1]
    num_tiles = n // row_tile
    flops = 2 * (n * n * f_pad + n * f_pad * f_pad)
    bytes_accessed = 2 * n * n + 4 * (2 * n * f_pad + f_pad * f_pad + f_pad)
    kernel = functools.partial(_graphconv_rowtile_kernel, apply_relu=apply_relu)
    return pl.pallas_call(
        kernel,
        out_shape=jax.ShapeDtypeStruct((n, f_pad), jnp.float32),
        grid=(num_tiles,),
        in_specs=[
            pl.BlockSpec((row_tile, n), lambda i: (i, 0)),       # A_hat row tile
            pl.BlockSpec((n, f_pad), lambda i: (0, 0)),          # full H (resident)
            pl.BlockSpec((f_pad, f_pad), lambda i: (0, 0)),      # W
            pl.BlockSpec((1, f_pad), lambda i: (0, 0)),          # bias
        ],
        out_specs=pl.BlockSpec((row_tile, f_pad), lambda i: (i, 0)),
        compiler_params=pltpu.CompilerParams(
            dimension_semantics=("parallel",)),
        cost_estimate=pl.CostEstimate(flops=flops, transcendentals=0,
                                      bytes_accessed=bytes_accessed),
    )(a_bf16, h_pad, w_pad, b_pad)


# -----------------------------------------------------------------------------
# Driver mirroring GCN.forward (eval mode).
# -----------------------------------------------------------------------------
def gcn_forward(a_hat, features, params, latent=None, *, row_tile=None,
                use_fused=None):
    """Stack of GraphConv layers, ReLU on all but the last.

    nn.Dropout is identity at inference time, so it is omitted.
    """
    n_total = len(params)
    if latent is not None and (latent < 0 or latent > n_total):
        raise ValueError("Invald interal layer requested")

    n = a_hat.shape[0]
    dims = [params[0][0].shape[0]] + [w.shape[1] for w, _ in params]
    f_pad = _round_up(max(max(dims), LANE), LANE)

    # Lane-pad everything to a multiple of 128. Padded W rows/cols and bias
    # entries are zero, so padded H columns stay exactly zero layer to layer.
    h0 = jnp.zeros((n, f_pad), jnp.float32).at[:, :features.shape[1]].set(features)
    w_stack = jnp.stack([
        jnp.zeros((f_pad, f_pad), jnp.float32).at[:w.shape[0], :w.shape[1]].set(w)
        for w, _ in params])
    b_stack = jnp.stack([
        jnp.zeros((1, f_pad), jnp.float32).at[0, :b.shape[0]].set(b)
        for _, b in params])
    a_bf16 = a_hat.astype(jnp.bfloat16)      # halve A_hat HBM/VMEM traffic

    # Conservative VMEM budget for the fused path (covers double buffering and
    # v7x's smaller 64 MiB VMEM); otherwise fall back to the row-tiled path.
    fused_bytes = 2 * (2 * n * n) + 3 * (4 * n * f_pad) + 4 * 4 * f_pad * f_pad
    auto_fused = latent is None and fused_bytes <= 20 * 1024 * 1024
    if use_fused is None:
        use_fused = auto_fused
    else:
        use_fused = bool(use_fused) and latent is None

    if use_fused:
        out = _gcn_forward_fused(a_bf16, h0, w_stack, b_stack)
        return out[:, :dims[-1]]

    if row_tile is None:
        row_tile = next((t for t in (512, 256, 128, 64, 32, 16, 8)
                         if n % t == 0), n)
    h = h0
    for i in range(n_total):
        apply_relu = i != n_total - 1
        h = _graph_conv_rowtiled(a_bf16, h, w_stack[i], b_stack[i],
                                 apply_relu=apply_relu, row_tile=row_tile)
        if i == latent:
            return h[:, :dims[i + 1]]
    return h[:, :dims[-1]]


# -----------------------------------------------------------------------------
# Pure-JAX reference (f32 everywhere) and input builders.
# -----------------------------------------------------------------------------
def gcn_forward_ref(a_hat, features, params):
    h = features
    for i, (w, b) in enumerate(params):
        h = a_hat @ (h @ w) + b
        if i != len(params) - 1:
            h = jnp.maximum(h, 0.0)
    return h


def make_normalized_adjacency(key, n_nodes, edge_prob=0.15):
    """Random symmetric graph with self-loops, D^{-1/2} A D^{-1/2}."""
    m = jax.random.uniform(key, (n_nodes, n_nodes)) < edge_prob
    a = jnp.logical_or(m, m.T).astype(jnp.float32)
    a = a + jnp.eye(n_nodes, dtype=jnp.float32)      # self-loops: no zero degree
    a = jnp.minimum(a, 1.0)
    deg = a.sum(axis=1)
    d_inv_sqrt = 1.0 / jnp.sqrt(deg)
    return a * d_inv_sqrt[:, None] * d_inv_sqrt[None, :]


def init_params(key, num_features, n_hidden, n_layers, num_classes):
    """Glorot-uniform weights, zero biases (DGL GraphConv defaults).

    Layer dims: [num_features -> n_hidden] + (n_layers-1)*[n_hidden -> n_hidden]
                + [n_hidden -> num_classes]
    """
    dims = [num_features] + [n_hidden] * n_layers + [num_classes]
    params = []
    for f_in, f_out in zip(dims[:-1], dims[1:]):
        key, wk = jax.random.split(key)
        limit = jnp.sqrt(6.0 / (f_in + f_out))
        w = jax.random.uniform(wk, (f_in, f_out), jnp.float32, -limit, limit)
        b = jnp.zeros((f_out,), jnp.float32)
        params.append((w, b))
    return params


if __name__ == "__main__":
    # Shapes consistent with the module's __init__:
    #   ds.num_features=32, n_hidden=32, n_layers=2, ds.num_classes=8
    NUM_FEATURES, N_HIDDEN, N_LAYERS, NUM_CLASSES = 32, 32, 2, 8
    # TODO(synk): dropout (training mode) not implemented; eval-mode identity.

    key = jax.random.PRNGKey(0)
    k_g1, k_x1, k_param, k_g2, k_x2 = jax.random.split(key, 5)
    params = init_params(k_param, NUM_FEATURES, N_HIDDEN, N_LAYERS, NUM_CLASSES)

    # --- small graph: fused whole-network kernel --------------------------------
    n_small = 64
    a_small = make_normalized_adjacency(k_g1, n_small)
    x_small = jax.random.normal(k_x1, (n_small, NUM_FEATURES), jnp.float32)
    out_small = jax.block_until_ready(gcn_forward(a_small, x_small, params))
    ref_small = gcn_forward_ref(a_small, x_small, params)
    assert out_small.shape == (n_small, NUM_CLASSES), out_small.shape
    assert bool(jnp.isfinite(out_small).all())
    assert float(jnp.max(jnp.abs(out_small - ref_small))) < 0.1  # bf16 MXU inputs

    # --- larger graph: row-tiled "parallel" per-layer path ----------------------
    n_big = 256
    a_big = make_normalized_adjacency(k_g2, n_big)
    x_big = jax.random.normal(k_x2, (n_big, NUM_FEATURES), jnp.float32)
    out_big = jax.block_until_ready(
        gcn_forward(a_big, x_big, params, row_tile=128, use_fused=False))
    ref_big = gcn_forward_ref(a_big, x_big, params)
    assert out_big.shape == (n_big, NUM_CLASSES), out_big.shape
    assert bool(jnp.isfinite(out_big).all())
    assert float(jnp.max(jnp.abs(out_big - ref_big))) < 0.1

    print("KERNEL_OK")
</pallas_src>

<mosaic_0001>
module attributes {stable_mosaic.version = 11 : i64} {
  func.func @_gcn_stack_kernel(%arg0: i32, %arg1: memref<64x64xbf16, #tpu.memory_space<vmem>>, %arg2: memref<64x128xf32, #tpu.memory_space<vmem>>, %arg3: memref<1x128x128xf32, #tpu.memory_space<vmem>>, %arg4: memref<1x1x128xf32, #tpu.memory_space<vmem>>, %arg5: memref<64x128xf32, #tpu.memory_space<vmem>>) attributes {dimension_semantics = [#tpu.dimension_semantics<arbitrary>], iteration_bounds = array<i64: 3>, scalar_prefetch = 0 : i64, scratch_operands = 0 : i64, tpu.core_type = #tpu.core_type<tc>, window_params = [{pipeline_mode = #tpu.pipeline_mode<synchronous>, transform_indices = @transform_0, window_bounds = array<i64: 64, 64>}, {pipeline_mode = #tpu.pipeline_mode<synchronous>, transform_indices = @transform_1, window_bounds = array<i64: 64, 128>}, {transform_indices = @transform_2, window_bounds = array<i64: 1, 128, 128>}, {transform_indices = @transform_3, window_bounds = array<i64: 1, 1, 128>}, {pipeline_mode = #tpu.pipeline_mode<synchronous>, transform_indices = @transform_4, window_bounds = array<i64: 64, 128>}]} {
    %c0_i32 = arith.constant 0 : i32
    %0 = arith.cmpi eq, %arg0, %c0_i32 : i32
    %1 = arith.extui %0 : i1 to i32
    %c0_i32_0 = arith.constant 0 : i32
    %2 = arith.cmpi ne, %1, %c0_i32_0 : i32
    scf.if %2 {
      %c0_14 = arith.constant 0 : index
      %c0_15 = arith.constant 0 : index
      %22 = vector.load %arg2[%c0_14, %c0_15] : memref<64x128xf32, #tpu.memory_space<vmem>>, vector<64x128xf32>
      %c0_16 = arith.constant 0 : index
      %c0_17 = arith.constant 0 : index
      %23 = vector.load %arg5[%c0_16, %c0_17] : memref<64x128xf32, #tpu.memory_space<vmem>>, vector<64x128xf32>
      tpu.vector_store %arg5[%c0_16, %c0_17], %22 {strides = array<i32>} : memref<64x128xf32, #tpu.memory_space<vmem>>, vector<64x128xf32>,
    } else {
    }
    %c0 = arith.constant 0 : index
    %c0_1 = arith.constant 0 : index
    %3 = vector.load %arg5[%c0, %c0_1] : memref<64x128xf32, #tpu.memory_space<vmem>>, vector<64x128xf32>
    %4 = arith.truncf %3 : vector<64x128xf32> to vector<64x128xbf16>
    %c0_2 = arith.constant 0 : index
    %c0_3 = arith.constant 0 : index
    %c0_4 = arith.constant 0 : index
    %5 = vector.load %arg3[%c0_2, %c0_3, %c0_4] : memref<1x128x128xf32, #tpu.memory_space<vmem>>, vector<1x128x128xf32>
    %6 = vector.shape_cast %5 : vector<1x128x128xf32> to vector<128x128xf32>
    %7 = arith.truncf %6 : vector<128x128xf32> to vector<128x128xbf16>
    %cst = arith.constant dense<0.000000e+00> : vector<64x128xf32>
    %8 = tpu.matmul %4, %7, %cst {dimension_numbers = #tpu.dot_dimension_numbers<[1], [0], [0], [1], [0, 0, 1, 1], [], []>} : vector<64x128xbf16>, vector<128x128xbf16>, vector<64x128xf32> -> vector<64x128xf32>
    %c0_5 = arith.constant 0 : index
    %c0_6 = arith.constant 0 : index
    %9 = vector.load %arg1[%c0_5, %c0_6] : memref<64x64xbf16, #tpu.memory_space<vmem>>, vector<64x64xbf16>
    %10 = arith.truncf %8 : vector<64x128xf32> to vector<64x128xbf16>
    %cst_7 = arith.constant dense<0.000000e+00> : vector<64x128xf32>
    %11 = tpu.matmul %9, %10, %cst_7 {dimension_numbers = #tpu.dot_dimension_numbers<[1], [0], [0], [1], [0, 0, 1, 1], [], []>} : vector<64x64xbf16>, vector<64x128xbf16>, vector<64x128xf32> -> vector<64x128xf32>
    %c0_8 = arith.constant 0 : index
    %c0_9 = arith.constant 0 : index
    %c0_10 = arith.constant 0 : index
    %12 = vector.load %arg4[%c0_8, %c0_9, %c0_10] : memref<1x1x128xf32, #tpu.memory_space<vmem>>, vector<1x1x128xf32>
    %13 = vector.shape_cast %12 : vector<1x1x128xf32> to vector<1x128xf32>
    %14 = vector.broadcast %13 : vector<1x128xf32> to vector<64x128xf32>
    %15 = arith.addf %11, %14 : vector<64x128xf32>
    %c2_i32 = arith.constant 2 : i32
    %16 = arith.cmpi ne, %arg0, %c2_i32 : i32
    %17 = arith.extui %16 : i1 to i32
    %c0_i32_11 = arith.constant 0 : i32
    %18 = arith.cmpi ne, %17, %c0_i32_11 : i32
    scf.if %18 {
      %cst_14 = arith.constant 0.000000e+00 : f32
      %22 = vector.broadcast %cst_14 : f32 to vector<64x128xf32>
      %23 = arith.maximumf %15, %22 : vector<64x128xf32>
      %c0_15 = arith.constant 0 : index
      %c0_16 = arith.constant 0 : index
      %24 = vector.load %arg5[%c0_15, %c0_16] : memref<64x128xf32, #tpu.memory_space<vmem>>, vector<64x128xf32>
      tpu.vector_store %arg5[%c0_15, %c0_16], %23 {strides = array<i32>} : memref<64x128xf32, #tpu.memory_space<vmem>>, vector<64x128xf32>,
    } else {
    }
    %c2_i32_12 = arith.constant 2 : i32
    %19 = arith.cmpi eq, %arg0, %c2_i32_12 : i32
    %20 = arith.extui %19 : i1 to i32
    %c0_i32_13 = arith.constant 0 : i32
    %21 = arith.cmpi ne, %20, %c0_i32_13 : i32
    scf.if %21 {
      %c0_14 = arith.constant 0 : index
      %c0_15 = arith.constant 0 : index
      %22 = vector.load %arg5[%c0_14, %c0_15] : memref<64x128xf32, #tpu.memory_space<vmem>>, vector<64x128xf32>
      tpu.vector_store %arg5[%c0_14, %c0_15], %15 {strides = array<i32>} : memref<64x128xf32, #tpu.memory_space<vmem>>, vector<64x128xf32>,
    } else {
    }
    return
  }
  func.func @transform_0(%arg0: i32) -> (i32, i32) {
    %c0_i32 = arith.constant 0 : i32
    %c0_i32_0 = arith.constant 0 : i32
    %c0_i32_1 = arith.constant 0 : i32
    return %c0_i32, %c0_i32_0 : i32, i32
  }
  func.func @transform_1(%arg0: i32) -> (i32, i32) {
    %c0_i32 = arith.constant 0 : i32
    %c0_i32_0 = arith.constant 0 : i32
    %c0_i32_1 = arith.constant 0 : i32
    return %c0_i32, %c0_i32_0 : i32, i32
  }
  func.func @transform_2(%arg0: i32) -> (i32, i32, i32) {
    %c0_i32 = arith.constant 0 : i32
    %c0_i32_0 = arith.constant 0 : i32
    %c0_i32_1 = arith.constant 0 : i32
    return %arg0, %c0_i32, %c0_i32_0 : i32, i32, i32
  }
  func.func @transform_3(%arg0: i32) -> (i32, i32, i32) {
    %c0_i32 = arith.constant 0 : i32
    %c0_i32_0 = arith.constant 0 : i32
    %c0_i32_1 = arith.constant 0 : i32
    return %arg0, %c0_i32, %c0_i32_0 : i32, i32, i32
  }
  func.func @transform_4(%arg0: i32) -> (i32, i32) {
    %c0_i32 = arith.constant 0 : i32
    %c0_i32_0 = arith.constant 0 : i32
    %c0_i32_1 = arith.constant 0 : i32
    return %c0_i32, %c0_i32_0 : i32, i32
  }
}

</mosaic_0001>

<llo_original>
// kernel: tpu_custom_call.1
$region0: #{tpu_custom_call.1}
  #allocation0 [shape = 'u32[]', space=smem, size = 0x4, offset = 0x4, fixed_abs, tag = 'smem constant byte address 0x4 - core index']
  #allocation1 [shape = 'u32[72,128]{1,0:T(1,128)}', space=vmem, size = 0x9000, scoped, tag = 'internal scratch']
  %s0 = inlined_call_operand.hbm [shape: bf16[64,64], index: 0, kind: input, shape index: {}]
  %s1 = inlined_call_operand.hbm [shape: f32[64,128], index: 1, kind: input, shape index: {}]
  %s2 = inlined_call_operand.hbm [shape: f32[3,128,128], index: 2, kind: input, shape index: {}]
  %s3 = inlined_call_operand.hbm [shape: f32[3,1,128], index: 3, kind: input, shape index: {}]
  %s4 = inlined_call_operand.hbm [shape: f32[64,128], index: 4, kind: output, shape index: {}]
  %s5 = sld [smem:[#allocation0]]
  $region77: #{tpu_custom_call.1} parent=0
    _
  %s7 = ssub.s32 1, %s5
  %s8 = scalar_select 0, %s7, %s5
  $region1: #{tpu_custom_call.1} parent=0
    #allocation2 [shape = 'u8[16384]{0}', space=vmem, size = 0x4000, scoped, tag = 'input window, operand 0, single buffered']
    #allocation3 [shape = 's32[2]{0}', space=sflag, size = 0x8, scoped, tag = 'scoped memory for tpu_custom_call.1']
    #allocation4 [shape = 's32[2]{0}', space=sflag, size = 0x8, scoped, tag = 'scoped memory for tpu_custom_call.1']
    #allocation5 [shape = 'u8[32768]{0}', space=vmem, size = 0x8000, scoped, tag = 'input window, operand 1, single buffered']
    #allocation6 [shape = 's32[1]{0}', space=sflag, size = 0x4, scoped, tag = 'scoped memory for tpu_custom_call.1']
    #allocation7 [shape = 'u8[131072]{0}', space=vmem, size = 0x20000, scoped, tag = 'input window, operand 2']
    #allocation8 [shape = 'u8[1024]{0}', space=vmem, size = 0x400, scoped, tag = 'input window, operand 3']
    #allocation9 [shape = 'u8[32768]{0}', space=vmem, size = 0x8000, scoped, tag = 'output window, operand 0, single buffered']
    %9 = vsyncpa [#allocation3], 0
    %10 = vsyncpa [#allocation6], 0
    %11 = vsyncpa [#allocation4], 0
    loop: start=0, step=1, limit=5
    $region2: #{tpu_custom_call.1} parent=1 // loop_pre_header
      _
    $region3: #{tpu_custom_call.1} parent=1 // loop_header
      %s13 = sphi 0, %s17
      %p14 = scmp.ge.s32.totalorder %s13, 5
      %s21 = sphi 0, %s21
      %s23 = sphi 0, %s21
      %s24 = sphi 0, %s23
      %s38 = sphi 0, %s24
      %s42 = sphi 0, %s42
      %s44 = sphi 0, %s42
      %s45 = sphi 0, %s44
      %s59 = sphi 0, %s45
      %s65 = sphi 0, %s67
      %s68 = sphi 0, %s65
      %s69 = sphi 0, %s68
      %s85 = sphi 0, %s69
      %s91 = sphi 0, %s93
      %s94 = sphi 0, %s91
      %s95 = sphi 0, %s94
      %s111 = sphi 0, %s95
      %s115 = sphi 0, %s115
      %s117 = sphi 0, %s115
      %s118 = sphi 0, %s117
      %s132 = sphi 0, %s118
    $region4: #{tpu_custom_call.1} parent=1 // loop_header_branch
      %16 = sbr.rel (%p14) target = $region8
    $region5: #{tpu_custom_call.1} parent=1 // loop_body
      %s18 = ssub.s32 %s13, 1
      %s19 = ssub.s32 %s13, 2
      %s20 = sadd.s32 %s13, 1
      %s22 = sadd.s32 %s21, 1
      %p25 = scmp.eq.s32.totalorder %s13, 2
      %p26 = scmp.ne.s32.totalorder %s21, %s23
      %p27 = scmp.eq.s32.totalorder %s13, 0
      %p28 = por %p26, %p27
      %p29 = scmp.ne.s32.totalorder %s21, %s23
      %p30 = scmp.eq.s32.totalorder %s18, 2
      %p31 = por %p29, %p30
      %p32 = scmp.ne.s32.totalorder %s23, %s24
      %p33 = scmp.eq.s32.totalorder %s18, 0
      %p34 = por %p32, %p33
      %p35 = scmp.ne.s32.totalorder %s23, %s24
      %p36 = scmp.eq.s32.totalorder %s19, 2
      %p37 = por %p35, %p36
      %p39 = scmp.ne.s32.totalorder %s24, %s38
      %p40 = scmp.eq.s32.totalorder %s19, 0
      %p41 = por %p39, %p40
      %s43 = sadd.s32 %s42, 1
      %p46 = scmp.eq.s32.totalorder %s13, 2
      %p47 = scmp.ne.s32.totalorder %s42, %s44
      %p48 = scmp.eq.s32.totalorder %s13, 0
      %p49 = por %p47, %p48
      %p50 = scmp.ne.s32.totalorder %s42, %s44
      %p51 = scmp.eq.s32.totalorder %s18, 2
      %p52 = por %p50, %p51
      %p53 = scmp.ne.s32.totalorder %s44, %s45
      %p54 = scmp.eq.s32.totalorder %s18, 0
      %p55 = por %p53, %p54
      %p56 = scmp.ne.s32.totalorder %s44, %s45
      %p57 = scmp.eq.s32.totalorder %s19, 2
      %p58 = por %p56, %p57
      %p60 = scmp.ne.s32.totalorder %s45, %s59
      %p61 = scmp.eq.s32.totalorder %s19, 0
      %p62 = por %p60, %p61
      %s63 = ssub.s32 %s13, %s20
      %p64 = scmp.eq.s32.totalorder %s63, 0
      %s66 = sadd.s32 %s65, 1
      %s67 = scalar_select %p64, %s65, %s66
      %p70 = pneg %p64
      %p71 = scmp.eq.s32.totalorder %s13, 2
      %p72 = por %p70, %p71
      %p73 = scmp.ne.s32.totalorder %s65, %s68
      %p74 = scmp.eq.s32.totalorder %s13, 0
      %p75 = por %p73, %p74
      %p76 = scmp.ne.s32.totalorder %s65, %s68
      %p77 = scmp.eq.s32.totalorder %s18, 2
      %p78 = por %p76, %p77
      %p79 = scmp.ne.s32.totalorder %s68, %s69
      %p80 = scmp.eq.s32.totalorder %s18, 0
      %p81 = por %p79, %p80
      %p82 = scmp.ne.s32.totalorder %s68, %s69
      %p83 = scmp.eq.s32.totalorder %s19, 2
      %p84 = por %p82, %p83
      %p86 = scmp.ne.s32.totalorder %s69, %s85
      %p87 = scmp.eq.s32.totalorder %s19, 0
      %p88 = por %p86, %p87
      %s89 = ssub.s32 %s13, %s20
      %p90 = scmp.eq.s32.totalorder %s89, 0
      %s92 = sadd.s32 %s91, 1
      %s93 = scalar_select %p90, %s91, %s92
      %p96 = pneg %p90
      %p97 = scmp.eq.s32.totalorder %s13, 2
      %p98 = por %p96, %p97
      %p99 = scmp.ne.s32.totalorder %s91, %s94
      %p100 = scmp.eq.s32.totalorder %s13, 0
      %p101 = por %p99, %p100
      %p102 = scmp.ne.s32.totalorder %s91, %s94
      %p103 = scmp.eq.s32.totalorder %s18, 2
      %p104 = por %p102, %p103
      %p105 = scmp.ne.s32.totalorder %s94, %s95
      %p106 = scmp.eq.s32.totalorder %s18, 0
      %p107 = por %p105, %p106
      %p108 = scmp.ne.s32.totalorder %s94, %s95
      %p109 = scmp.eq.s32.totalorder %s19, 2
      %p110 = por %p108, %p109
      %p112 = scmp.ne.s32.totalorder %s95, %s111
      %p113 = scmp.eq.s32.totalorder %s19, 0
      %p114 = por %p112, %p113
      %s116 = sadd.s32 %s115, 1
      %p119 = scmp.eq.s32.totalorder %s13, 2
      %p120 = scmp.ne.s32.totalorder %s115, %s117
      %p121 = scmp.eq.s32.totalorder %s13, 0
      %p122 = por %p120, %p121
      %p123 = scmp.ne.s32.totalorder %s115, %s117
      %p124 = scmp.eq.s32.totalorder %s18, 2
      %p125 = por %p123, %p124
      %p126 = scmp.ne.s32.totalorder %s117, %s118
      %p127 = scmp.eq.s32.totalorder %s18, 0
      %p128 = por %p126, %p127
      %p129 = scmp.ne.s32.totalorder %s117, %s118
      %p130 = scmp.eq.s32.totalorder %s19, 2
      %p131 = por %p129, %p130
      %p133 = scmp.ne.s32.totalorder %s118, %s132
      %p134 = scmp.eq.s32.totalorder %s19, 0
      %p135 = por %p133, %p134
      %p136 = scmp.le.s32.totalorder 1, %s13
      %p137 = scmp.lt.s32.totalorder %s13, 4
      %p138 = pnand %p136, %p137
      %p139 = pneg %p138
      // Predicated region
      $region9: #{tpu_custom_call.1} parent=5 // pred_check
        _
      $region10: #{tpu_custom_call.1} parent=5 // pred_check_branch
        %141 = sbr.rel (%p138) target = $region12
      $region11: #{tpu_custom_call.1} parent=5 // pred_region
        %s142 = ssub.s32 %s13, 1
        // Predicated region
        $region13: #{tpu_custom_call.1} parent=11 // pred_check
          %p143 = pneg %p34
        $region14: #{tpu_custom_call.1} parent=11 // pred_check_branch
          %145 = sbr.rel (%p143) target = $region16
        $region15: #{tpu_custom_call.1} parent=11 // pred_region
          %147 = vsyncadd [#allocation3], 0
          %s148 = sshll.u32 %s0, 4
          %s149 = int_to_ptr.hbm [resolvable:$true] %s148
          %s150 = sshll.u32 [#allocation2], 4
          %s151 = int_to_ptr.vmem [resolvable:$true] %s150
          %156 = dma.hbm_to_vmem [thread:$0]  %s149, 512, %s151, [#allocation3], 64, 64, 4
        $region16: #{tpu_custom_call.1} parent=11 // pred_fallthru
          _
        // Predicated region
        $region17: #{tpu_custom_call.1} parent=11 // pred_check
          %p157 = pneg %p55
        $region18: #{tpu_custom_call.1} parent=11 // pred_check_branch
          %159 = sbr.rel (%p157) target = $region20
        $region19: #{tpu_custom_call.1} parent=11 // pred_region
          %161 = vsyncadd [#allocation6], 0
          %s162 = sshll.u32 %s1, 4
          %s163 = int_to_ptr.hbm [resolvable:$true] %s162
          %s164 = sshll.u32 [#allocation5], 4
          %s165 = int_to_ptr.vmem [resolvable:$true] %s164
          %170 = dma.hbm_to_vmem [thread:$0]  %s163, 1024, %s165, [#allocation6], 128, 128, 8
        $region20: #{tpu_custom_call.1} parent=11 // pred_fallthru
          _
      $region12: #{tpu_custom_call.1} parent=5 // pred_fallthru
        _
      %p171 = scmp.lt.s32.totalorder %s13, 3
      // Predicated region
      $region21: #{tpu_custom_call.1} parent=5 // pred_check
        %p172 = pneg %p171
      $region22: #{tpu_custom_call.1} parent=5 // pred_check_branch
        %174 = sbr.rel (%p172) target = $region24
      $region23: #{tpu_custom_call.1} parent=5 // pred_region
        // Predicated region
        $region25: #{tpu_custom_call.1} parent=23 // pred_check
          %p175 = pneg %p75
        $region26: #{tpu_custom_call.1} parent=23 // pred_check_branch
          %177 = sbr.rel (%p175) target = $region28
        $region27: #{tpu_custom_call.1} parent=23 // pred_region
          %s178 = sand.u32 %s13, 1
          %s179 = scalar_lea.sflag [#allocation3], %s178
          %s180 = sand.u32 %s65, 1
          %s181 = smul.addr %s180, 128
          %s182 = scalar_lea.vmem [#allocation7], %s181
          %184 = vsyncadd %s179, 0
          %s185 = smul.addr %s13, 16
          %s186 = smul.addr %s185, 8
          %s187 = scalar_lea.hbm %s2, %s186
          %s188 = sshll.u32 %s187, 4
          %s189 = int_to_ptr.hbm [resolvable:$true] %s188
          %s190 = sshll.u32 %s182, 4
          %s191 = int_to_ptr.vmem [resolvable:$true] %s190
          %196 = dma.hbm_to_vmem [thread:$0]  %s189, 2048, %s191, %s179, 128, 128, 8
        $region28: #{tpu_custom_call.1} parent=23 // pred_fallthru
          _
        // Predicated region
        $region29: #{tpu_custom_call.1} parent=23 // pred_check
          %p197 = pneg %p101
        $region30: #{tpu_custom_call.1} parent=23 // pred_check_branch
          %199 = sbr.rel (%p197) target = $region32
        $region31: #{tpu_custom_call.1} parent=23 // pred_region
          %s200 = sand.u32 %s13, 1
          %s201 = scalar_lea.sflag [#allocation3], %s200
          %s202 = sand.u32 %s91, 1
          %s203 = scalar_lea.vmem [#allocation8], %s202
          %205 = vsyncadd %s201, 0
          %s206 = scalar_lea.hbm %s3, %s13
          %s208 = sshll.u32 %s206, 4
          %s209 = int_to_ptr.hbm [resolvable:$true] %s208
          %s210 = sshll.u32 %s203, 4
          %s211 = int_to_ptr.vmem [resolvable:$true] %s210
          %213 = dma.hbm_to_vmem [thread:$0]  %s209, 16, %s211, %s201
        $region32: #{tpu_custom_call.1} parent=23 // pred_fallthru
          _
      $region24: #{tpu_custom_call.1} parent=5 // pred_fallthru
        _
      %p214 = scmp.le.s32.totalorder 1, %s13
      %p215 = scmp.lt.s32.totalorder %s13, 4
      %p216 = pnand %p214, %p215
      %p217 = pneg %p216
      // Predicated region
      $region33: #{tpu_custom_call.1} parent=5 // pred_check
        _
      $region34: #{tpu_custom_call.1} parent=5 // pred_check_branch
        %219 = sbr.rel (%p216) target = $region36
      $region35: #{tpu_custom_call.1} parent=5 // pred_region
        %s220 = ssub.s32 %s13, 1
        // Predicated region
        $region37: #{tpu_custom_call.1} parent=35 // pred_check
          %p221 = pneg %p34
        $region38: #{tpu_custom_call.1} parent=35 // pred_check_branch
          %223 = sbr.rel (%p221) target = $region40
        $region39: #{tpu_custom_call.1} parent=35 // pred_region
          %225 = dma.done [#allocation3], 512
        $region40: #{tpu_custom_call.1} parent=35 // pred_fallthru
          _
        // Predicated region
        $region41: #{tpu_custom_call.1} parent=35 // pred_check
          %p226 = pneg %p55
        $region42: #{tpu_custom_call.1} parent=35 // pred_check_branch
          %228 = sbr.rel (%p226) target = $region44
        $region43: #{tpu_custom_call.1} parent=35 // pred_region
          %230 = dma.done [#allocation6], 1024
        $region44: #{tpu_custom_call.1} parent=35 // pred_fallthru
          _
        %s231 = sand.u32 %s18, 1
        %s232 = scalar_lea.sflag [#allocation3], %s231
        %s233 = sand.u32 %s68, 1
        %s234 = smul.addr %s233, 128
        %s235 = scalar_lea.vmem [#allocation7], %s234
        // Predicated region
        $region45: #{tpu_custom_call.1} parent=35 // pred_check
          %p236 = pneg %p81
        $region46: #{tpu_custom_call.1} parent=35 // pred_check_branch
          %238 = sbr.rel (%p236) target = $region48
        $region47: #{tpu_custom_call.1} parent=35 // pred_region
          %240 = dma.done %s232, 2048
        $region48: #{tpu_custom_call.1} parent=35 // pred_fallthru
          _
        %s241 = sand.u32 %s18, 1
        %s242 = scalar_lea.sflag [#allocation3], %s241
        %s243 = sand.u32 %s94, 1
        %s244 = scalar_lea.vmem [#allocation8], %s243
        // Predicated region
        $region49: #{tpu_custom_call.1} parent=35 // pred_check
          %p245 = pneg %p107
        $region50: #{tpu_custom_call.1} parent=35 // pred_check_branch
          %247 = sbr.rel (%p245) target = $region52
        $region51: #{tpu_custom_call.1} parent=35 // pred_region
          %249 = dma.done %s242, 16
        $region52: #{tpu_custom_call.1} parent=35 // pred_fallthru
          _
        %p250 = pneg %p34
        %p251 = pneg %p31
        %p252 = pneg %p55
        %p253 = pneg %p52
        %s254 = sand.u32 %s18, 1
        %s255 = scalar_lea.sflag [#allocation3], %s254
        %s256 = sand.u32 %s68, 1
        %s257 = smul.addr %s256, 128
        %s258 = scalar_lea.vmem [#allocation7], %s257
        %p259 = pneg %p81
        %p260 = pneg %p78
        %s261 = sand.u32 %s18, 1
        %s262 = scalar_lea.sflag [#allocation3], %s261
        %s263 = sand.u32 %s94, 1
        %s264 = scalar_lea.vmem [#allocation8], %s263
        %p265 = pneg %p107
        %p266 = pneg %p104
        %p267 = pneg %p128
        %p268 = pneg %p125
        %p270 = scmp.eq.s32.totalorder %s18, 0
        // Predicated region
        $region53: #{tpu_custom_call.1} parent=35 // pred_check
          %p271 = pneg %p270
        $region54: #{tpu_custom_call.1} parent=35 // pred_check_branch
          %273 = sbr.rel (%p271) target = $region56
        $region55: #{tpu_custom_call.1} parent=35 // pred_region
          %v274 = vld [vmem:[#allocation5] sm:$0xff]
          %v275 = vld [vmem:[#allocation5 + $0x8] sm:$0xff]
          %v276 = vld [vmem:[#allocation5 + $0x10] sm:$0xff]
          %v277 = vld [vmem:[#allocation5 + $0x18] sm:$0xff]
          %v278 = vld [vmem:[#allocation5 + $0x20] sm:$0xff]
          %v279 = vld [vmem:[#allocation5 + $0x28] sm:$0xff]
          %v280 = vld [vmem:[#allocation5 + $0x30] sm:$0xff]
          %v281 = vld [vmem:[#allocation5 + $0x38] sm:$0xff]
          %282 = vst [vmem:[#allocation9] sm:$0xff] %v274
          %283 = vst [vmem:[#allocation9 + $0x8] sm:$0xff] %v275
          %284 = vst [vmem:[#allocation9 + $0x10] sm:$0xff] %v276
          %285 = vst [vmem:[#allocation9 + $0x18] sm:$0xff] %v277
          %286 = vst [vmem:[#allocation9 + $0x20] sm:$0xff] %v278
          %287 = vst [vmem:[#allocation9 + $0x28] sm:$0xff] %v279
          %288 = vst [vmem:[#allocation9 + $0x30] sm:$0xff] %v280
          %289 = vst [vmem:[#allocation9 + $0x38] sm:$0xff] %v281
        $region56: #{tpu_custom_call.1} parent=35 // pred_fallthru
          _
        %v290 = vld [vmem:[#allocation9] sm:$0xff]
        %v291 = vld [vmem:[#allocation9 + $0x8] sm:$0xff]
        %v292 = vld [vmem:[#allocation9 + $0x10] sm:$0xff]
        %v293 = vld [vmem:[#allocation9 + $0x18] sm:$0xff]
        %v294 = vld [vmem:[#allocation9 + $0x20] sm:$0xff]
        %v295 = vld [vmem:[#allocation9 + $0x28] sm:$0xff]
        %v296 = vld [vmem:[#allocation9 + $0x30] sm:$0xff]
        %v297 = vld [vmem:[#allocation9 + $0x38] sm:$0xff]
        %v298 = vpack.c.bf16 %v291, %v290
        %v299 = vpack.c.bf16 %v293, %v292
        %v300 = vpack.c.bf16 %v295, %v294
        %v301 = vpack.c.bf16 %v297, %v296
        %v302 = vld [vmem:[%s235] sm:$0xff]
        %v303 = vld [vmem:[%s235 + $0x8] sm:$0xff]
        %v304 = vld [vmem:[%s235 + $0x10] sm:$0xff]
        %v305 = vld [vmem:[%s235 + $0x18] sm:$0xff]
        %v306 = vld [vmem:[%s235 + $0x20] sm:$0xff]
        %v307 = vld [vmem:[%s235 + $0x28] sm:$0xff]
        %v308 = vld [vmem:[%s235 + $0x30] sm:$0xff]
        %v309 = vld [vmem:[%s235 + $0x38] sm:$0xff]
        %v310 = vld [vmem:[%s235 + $0x40] sm:$0xff]
        %v311 = vld [vmem:[%s235 + $0x48] sm:$0xff]
        %v312 = vld [vmem:[%s235 + $0x50] sm:$0xff]
        %v313 = vld [vmem:[%s235 + $0x58] sm:$0xff]
        %v314 = vld [vmem:[%s235 + $0x60] sm:$0xff]
        %v315 = vld [vmem:[%s235 + $0x68] sm:$0xff]
        %v316 = vld [vmem:[%s235 + $0x70] sm:$0xff]
        %v317 = vld [vmem:[%s235 + $0x78] sm:$0xff]
        %v318 = vpack.c.bf16 %v303, %v302
        %v319 = vpack.c.bf16 %v305, %v304
        %v320 = vpack.c.bf16 %v307, %v306
        %v321 = vpack.c.bf16 %v309, %v308
        %v322 = vpack.c.bf16 %v311, %v310
        %v323 = vpack.c.bf16 %v313, %v312
        %v324 = vpack.c.bf16 %v315, %v314
        %v325 = vpack.c.bf16 %v317, %v316
        %326 = vmatpush.bf16.msra.mxu0 %v325
        %327 = vmatpush.bf16.msra.mxu0 %v324
        %328 = vmatpush.bf16.msra.mxu0 %v323
        %329 = vmatpush.bf16.msra.mxu0 %v322
        %330 = vmatpush.bf16.msra.mxu0 %v321
        %331 = vmatpush.bf16.msra.mxu0 %v320
        %332 = vmatpush.bf16.msra.mxu0 %v319
        %333 = vmatpush.bf16.msra.mxu0 %v318
        %334 = vmatmul.bf16.gmra.mxu0 %v298
        %v335 = vpop.f32.mrf.mxu0
        %v336 = vadd.f32 0.0, %v335
        %v337 = vpop.f32.mrf.mxu0
        %v338 = vadd.f32 0.0, %v337
        %339 = vmatmul.bf16.gmra.mxu0 %v299
        %v340 = vpop.f32.mrf.mxu0
        %v341 = vadd.f32 0.0, %v340
        %v342 = vpop.f32.mrf.mxu0
        %v343 = vadd.f32 0.0, %v342
        %344 = vmatmul.bf16.gmra.mxu0 %v300
        %v345 = vpop.f32.mrf.mxu0
        %v346 = vadd.f32 0.0, %v345
        %v347 = vpop.f32.mrf.mxu0
        %v348 = vadd.f32 0.0, %v347
        %349 = vmatmul.bf16.gmra.mxu0 %v301
        %v350 = vpop.f32.mrf.mxu0
        %v351 = vadd.f32 0.0, %v350
        %v352 = vpop.f32.mrf.mxu0
        %v353 = vadd.f32 0.0, %v352
        %354 = vdwg.mxu0
        %v355 = vld [vmem:[#allocation2] sm:$0xf]
        %v356 = vld [vmem:[#allocation2 + $0x4] sm:$0xf]
        %v357 = vld [vmem:[#allocation2 + $0x8] sm:$0xf]
        %v358 = vld [vmem:[#allocation2 + $0xc] sm:$0xf]
        %v359 = vld [vmem:[#allocation2 + $0x10] sm:$0xf]
        %v360 = vld [vmem:[#allocation2 + $0x14] sm:$0xf]
        %v361 = vld [vmem:[#allocation2 + $0x18] sm:$0xf]
        %v362 = vld [vmem:[#allocation2 + $0x1c] sm:$0xf]
        %v363 = vpack.c.bf16 %v338, %v336
        %v364 = vpack.c.bf16 %v343, %v341
        %v365 = vpack.c.bf16 %v348, %v346
        %v366 = vpack.c.bf16 %v353, %v351
        %v367 = vld [vmem:[%s244] sm:$0x1]
        %v369 = vperm.slane %v367, 0
        %v379 = vunpack.c.l.b16 %v355
        %v380 = vunpack.c.l.b16 %v356
        %v381 = vunpack.c.l.b16 %v357
        %v382 = vunpack.c.l.b16 %v358
        %v383 = vunpack.c.l.b16 %v359
        %v384 = vunpack.c.l.b16 %v360
        %v385 = vunpack.c.l.b16 %v361
        %v386 = vunpack.c.l.b16 %v362
        %v387 = vpack.c.b16 %v380, %v379
        %v388 = vpack.c.b16 %v382, %v381
        %v389 = vpack.c.b16 %v384, %v383
        %v390 = vpack.c.b16 %v386, %v385
        %vm391 = vcmask 523264
        %v393 = vsel %vm391, %v387, 0
        %v396 = vsel %vm391, %v388, 0
        %v399 = vsel %vm391, %v389, 0
        %v402 = vsel %vm391, %v390, 0
        %404 = vmatpush.bf16.msra.mxu0 0
        %405 = vmatpush.bf16.msra.mxu0 0
        %406 = vmatpush.bf16.msra.mxu0 0
        %407 = vmatpush.bf16.msra.mxu0 0
        %408 = vmatpush.bf16.msra.mxu0 %v366
        %409 = vmatpush.bf16.msra.mxu0 %v365
        %410 = vmatpush.bf16.msra.mxu0 %v364
        %411 = vmatpush.bf16.msra.mxu0 %v363
        %412 = vmatmul.bf16.gmra.mxu0 %v393
        %v413 = vpop.f32.mrf.mxu0
        %v414 = vadd.f32 %v369, %v413
        %v415 = vpop.f32.mrf.mxu0
        %v416 = vadd.f32 %v369, %v415
        %417 = vmatmul.bf16.gmra.mxu0 %v396
        %v418 = vpop.f32.mrf.mxu0
        %v419 = vadd.f32 %v369, %v418
        %v420 = vpop.f32.mrf.mxu0
        %v421 = vadd.f32 %v369, %v420
        %422 = vmatmul.bf16.gmra.mxu0 %v399
        %v423 = vpop.f32.mrf.mxu0
        %v424 = vadd.f32 %v369, %v423
        %v425 = vpop.f32.mrf.mxu0
        %v426 = vadd.f32 %v369, %v425
        %427 = vmatmul.bf16.gmra.mxu0 %v402
        %v428 = vpop.f32.mrf.mxu0
        %v429 = vadd.f32 %v369, %v428
        %v430 = vpop.f32.mrf.mxu0
        %v431 = vadd.f32 %v369, %v430
        %432 = vdwg.mxu0
        %p433 = scmp.ne.s32.totalorder %s18, 2
        // Predicated region
        $region57: #{tpu_custom_call.1} parent=35 // pred_check
          %p434 = pneg %p433
        $region58: #{tpu_custom_call.1} parent=35 // pred_check_branch
          %436 = sbr.rel (%p434) target = $region60
        $region59: #{tpu_custom_call.1} parent=35 // pred_region
          %v437 = vmax.f32 %v414, 0.0
          %v438 = vmax.f32 %v416, 0.0
          %v439 = vmax.f32 %v419, 0.0
          %v440 = vmax.f32 %v421, 0.0
          %v441 = vmax.f32 %v424, 0.0
          %v442 = vmax.f32 %v426, 0.0
          %v443 = vmax.f32 %v429, 0.0
          %v444 = vmax.f32 %v431, 0.0
          %445 = vst [vmem:[#allocation9] sm:$0xff] %v437
          %446 = vst [vmem:[#allocation9 + $0x8] sm:$0xff] %v438
          %447 = vst [vmem:[#allocation9 + $0x10] sm:$0xff] %v439
          %448 = vst [vmem:[#allocation9 + $0x18] sm:$0xff] %v440
          %449 = vst [vmem:[#allocation9 + $0x20] sm:$0xff] %v441
          %450 = vst [vmem:[#allocation9 + $0x28] sm:$0xff] %v442
          %451 = vst [vmem:[#allocation9 + $0x30] sm:$0xff] %v443
          %452 = vst [vmem:[#allocation9 + $0x38] sm:$0xff] %v444
        $region60: #{tpu_custom_call.1} parent=35 // pred_fallthru
          _
        %p453 = scmp.eq.s32.totalorder %s18, 2
        // Predicated region
        $region61: #{tpu_custom_call.1} parent=35 // pred_check
          %p454 = pneg %p453
        $region62: #{tpu_custom_call.1} parent=35 // pred_check_branch
          %456 = sbr.rel (%p454) target = $region64
        $region63: #{tpu_custom_call.1} parent=35 // pred_region
          %457 = vst [vmem:[#allocation9] sm:$0xff] %v414
          %458 = vst [vmem:[#allocation9 + $0x8] sm:$0xff] %v416
          %459 = vst [vmem:[#allocation9 + $0x10] sm:$0xff] %v419
          %460 = vst [vmem:[#allocation9 + $0x18] sm:$0xff] %v421
          %461 = vst [vmem:[#allocation9 + $0x20] sm:$0xff] %v424
          %462 = vst [vmem:[#allocation9 + $0x28] sm:$0xff] %v426
          %463 = vst [vmem:[#allocation9 + $0x30] sm:$0xff] %v429
          %464 = vst [vmem:[#allocation9 + $0x38] sm:$0xff] %v431
        $region64: #{tpu_custom_call.1} parent=35 // pred_fallthru
          _
        // Predicated region
        $region65: #{tpu_custom_call.1} parent=35 // pred_check
          %p465 = pneg %p125
        $region66: #{tpu_custom_call.1} parent=35 // pred_check_branch
          %467 = sbr.rel (%p465) target = $region68
        $region67: #{tpu_custom_call.1} parent=35 // pred_region
          %469 = vsyncadd [#allocation4], 0
          %s470 = sshll.u32 [#allocation9], 4
          %s471 = int_to_ptr.vmem [resolvable:$true] %s470
          %s472 = sshll.u32 %s4, 4
          %s473 = int_to_ptr.hbm [resolvable:$true] %s472
          %478 = dma.vmem_to_hbm [thread:$0]  %s471, 1024, %s473, [#allocation4], 128, 128, 8
        $region68: #{tpu_custom_call.1} parent=35 // pred_fallthru
          _
        // Predicated region
        $region69: #{tpu_custom_call.1} parent=35 // pred_check
          %p479 = pneg %p125
        $region70: #{tpu_custom_call.1} parent=35 // pred_check_branch
          %481 = sbr.rel (%p479) target = $region72
        $region71: #{tpu_custom_call.1} parent=35 // pred_region
          %483 = dma.done [#allocation4], 1024
        $region72: #{tpu_custom_call.1} parent=35 // pred_fallthru
          _
      $region36: #{tpu_custom_call.1} parent=5 // pred_fallthru
        _
      %p484 = scmp.le.s32.totalorder 2, %s13
      // Predicated region
      $region73: #{tpu_custom_call.1} parent=5 // pred_check
        %p485 = pneg %p484
      $region74: #{tpu_custom_call.1} parent=5 // pred_check_branch
        %487 = sbr.rel (%p485) target = $region76
      $region75: #{tpu_custom_call.1} parent=5 // pred_region
        %s488 = ssub.s32 %s13, 2
      $region76: #{tpu_custom_call.1} parent=5 // pred_fallthru
        _
    $region6: #{tpu_custom_call.1} parent=1 // loop_footer
      %s17 = sadd.s32 1, %s13
    $region7: #{tpu_custom_call.1} parent=1 // loop_footer_branch
      %12 = sbr.rel target = $region3
    $region8: #{tpu_custom_call.1} parent=1 // loop_exit
      _
    %489 = vsyncpa [#allocation3], 1
    %s490 = scalar_lea.sflag [#allocation3], 1
    %491 = vsyncpa %s490, 1
    %492 = vsyncpa [#allocation6], 1
    %493 = vsyncpa [#allocation4], 1
    %s494 = scalar_lea.sflag [#allocation4], 1
    %495 = vsyncpa %s494, 1

</llo_original>
